<compile_context>
chip_gen: v7x
topology: tpu7x:2x2x1
jax: 0.10.0
libtpu: 0.0.40
codegen_flags: <defaults>
</compile_context>

<pallas_src>
import functools

import jax
import jax.numpy as jnp
from jax.experimental import pallas as pl
from jax.experimental.pallas import tpu as pltpu

EPS = 1e-5                 # PyTorch BatchNorm2d default
LANE = 128                 # TPU lane width
DEFAULT_TM = 512           # rows (N*Ho*Wo) per grid step
MXU_DTYPE = jnp.bfloat16   # MXU input dtype (all accumulation / BN math in f32)


def _round_up(x, m):
    return (x + m - 1) // m * m


def _vmem_limit(estimate_bytes):
    # Explicit scoped-VMEM budget: 4x headroom over the static estimate,
    # floor 8 MiB, capped well below v7x's 64 MiB physical VMEM.
    return int(min(max(4 * estimate_bytes, 8 << 20), 48 << 20))


# ------------------------------ Pallas kernels -------------------------------
def _conv_stats_kernel(p_ref, w_ref, y_ref, stats_ref, *, inv_count):
    """Tiled conv-as-matmul + per-channel sum / sumsq accumulation.

    p_ref    : (TM, KF)  bf16 im2col patch tile
    w_ref    : (KF, Cp)  bf16 weight matrix (constant block index -> resident)
    y_ref    : (TM, Cp)  f32 conv output tile (lane-dense, Cp padded to 128)
    stats_ref: (8,  Cp)  f32 accumulator; rows 0/1 hold sum/sumsq during the
               sweep and mean/inv_std after the last grid step.
    """
    step = pl.program_id(0)

    @pl.when(step == 0)
    def _init():
        stats_ref[...] = jnp.zeros_like(stats_ref)

    # MXU matmul, f32 accumulation. Conv bias omitted (cancelled by BN mean).
    acc = jnp.dot(p_ref[...], w_ref[...], preferred_element_type=jnp.float32)
    y_ref[...] = acc

    # Per-channel running sums (zero-padded rows / channels contribute zeros).
    stats_ref[0:1, :] = stats_ref[0:1, :] + jnp.sum(acc, axis=0, keepdims=True)
    stats_ref[1:2, :] = stats_ref[1:2, :] + jnp.sum(acc * acc, axis=0, keepdims=True)

    @pl.when(step == pl.num_programs(0) - 1)
    def _finalize():
        mean = stats_ref[0:1, :] * inv_count
        var = stats_ref[1:2, :] * inv_count - mean * mean      # biased variance
        var = jnp.maximum(var, 0.0)
        stats_ref[0:1, :] = mean
        stats_ref[1:2, :] = jax.lax.rsqrt(var + EPS)


def _normalize_kernel(y_ref, scale_ref, shift_ref, o_ref):
    """Tiled per-channel affine normalize (BN folded into scale/shift)."""
    o_ref[...] = y_ref[...] * scale_ref[...] + shift_ref[...]


# ------------------------------ pallas_call wrappers --------------------------
def conv_stats_pallas(patches, w_mat, m_true, tm):
    Mp, KFp = patches.shape
    Cp = w_mat.shape[1]
    grid_m = Mp // tm

    in_bytes = patches.size * patches.dtype.itemsize + w_mat.size * w_mat.dtype.itemsize
    out_bytes = Mp * Cp * 4 + 8 * Cp * 4
    vmem_est = (2 * tm * (KFp * patches.dtype.itemsize + Cp * 4)
                + KFp * Cp * w_mat.dtype.itemsize + 8 * Cp * 4)

    kernel = functools.partial(_conv_stats_kernel, inv_count=1.0 / float(m_true))
    return pl.pallas_call(
        kernel,
        out_shape=(jax.ShapeDtypeStruct((Mp, Cp), jnp.float32),
                   jax.ShapeDtypeStruct((8, Cp), jnp.float32)),
        grid_spec=pltpu.PrefetchScalarGridSpec(
            num_scalar_prefetch=0,
            grid=(grid_m,),
            in_specs=[pl.BlockSpec((tm, KFp), lambda i: (i, 0)),
                      pl.BlockSpec((KFp, Cp), lambda i: (0, 0))],
            out_specs=(pl.BlockSpec((tm, Cp), lambda i: (i, 0)),
                       pl.BlockSpec((8, Cp), lambda i: (0, 0))),
        ),
        compiler_params=pltpu.CompilerParams(
            dimension_semantics=("arbitrary",),      # stats accumulate across M tiles
            vmem_limit_bytes=_vmem_limit(vmem_est)),
        cost_estimate=pl.CostEstimate(flops=int(2 * Mp * KFp * Cp),
                                      transcendentals=0,
                                      bytes_accessed=int(in_bytes + out_bytes)),
    )(patches, w_mat)


def normalize_pallas(y, scale, shift, tm):
    Mp, Cp = y.shape
    grid_m = Mp // tm
    vmem_est = 4 * tm * Cp * 4 + 2 * Cp * 4
    return pl.pallas_call(
        _normalize_kernel,
        out_shape=jax.ShapeDtypeStruct((Mp, Cp), jnp.float32),
        grid_spec=pltpu.PrefetchScalarGridSpec(
            num_scalar_prefetch=0,
            grid=(grid_m,),
            in_specs=[pl.BlockSpec((tm, Cp), lambda i: (i, 0)),
                      pl.BlockSpec((1, Cp), lambda i: (0, 0)),
                      pl.BlockSpec((1, Cp), lambda i: (0, 0))],
            out_specs=pl.BlockSpec((tm, Cp), lambda i: (i, 0)),
        ),
        compiler_params=pltpu.CompilerParams(
            dimension_semantics=("parallel",),       # v7x: both TCs split row tiles
            vmem_limit_bytes=_vmem_limit(vmem_est)),
        cost_estimate=pl.CostEstimate(flops=int(2 * Mp * Cp),
                                      transcendentals=0,
                                      bytes_accessed=int(2 * Mp * Cp * 4 + 2 * Cp * 4)),
    )(y, scale, shift)


# --------------------------------- JAX glue -----------------------------------
def conv_bn_stage(x_nhwc, w_oihw, gamma, beta, *, ksize, stride, dilation,
                  padding, mxu_dtype=MXU_DTYPE):
    """One Conv2d + training-mode BatchNorm2d stage on NHWC input."""
    N, H, W, Cin = x_nhwc.shape
    Cout = w_oihw.shape[0]

    # im2col as one fused XLA gather; feature order is (cin, kh, kw).
    patches = jax.lax.conv_general_dilated_patches(
        x_nhwc, (ksize, ksize), (stride, stride),
        [(padding, padding), (padding, padding)],
        rhs_dilation=(dilation, dilation),
        dimension_numbers=("NHWC", "HWIO", "NHWC"))
    Ho, Wo = patches.shape[1], patches.shape[2]
    KF = Cin * ksize * ksize
    assert patches.shape[3] == KF, (patches.shape, KF)
    M = N * Ho * Wo
    patches = patches.reshape(M, KF)

    # Padding: channels -> lane-dense 128, contraction -> bf16 sublane multiple,
    # rows -> whole number of grid tiles.
    Cp = _round_up(Cout, LANE)
    kf_align = 16 if mxu_dtype == jnp.bfloat16 else 8
    KFp = _round_up(KF, kf_align)
    tm = min(DEFAULT_TM, _round_up(M, 16))
    Mp = _round_up(M, tm)

    patches = jnp.pad(patches, ((0, Mp - M), (0, KFp - KF))).astype(mxu_dtype)
    # (O, I, KH, KW) -> (I, KH, KW, O) -> (KF, Cout): rows match patch features.
    w_mat = jnp.transpose(w_oihw, (1, 2, 3, 0)).reshape(KF, Cout)
    w_mat = jnp.pad(w_mat, ((0, KFp - KF), (0, Cp - Cout))).astype(mxu_dtype)

    y, stats = conv_stats_pallas(patches, w_mat, M, tm)

    # Fold BN affine + stats into a single per-channel scale/shift (tiny, f32).
    mean, inv_std = stats[0:1, :], stats[1:2, :]
    g = jnp.pad(gamma.astype(jnp.float32), (0, Cp - Cout)).reshape(1, Cp)
    b = jnp.pad(beta.astype(jnp.float32), (0, Cp - Cout)).reshape(1, Cp)
    scale = g * inv_std
    shift = b - mean * scale

    out = normalize_pallas(y, scale, shift, tm)
    return out[:M, :Cout].reshape(N, Ho, Wo, Cout)


def encode_block_forward(x_nchw, params):
    """EncodeBlock forward: (N, Cin, H, W) -> (N, Cout, H//2, W//2).

    Conv biases are accepted but unused: each conv is immediately followed by
    training-mode BatchNorm, whose mean subtraction cancels a per-channel bias.
    """
    w1, b1, g1, bt1, w2, b2, g2, bt2 = params
    del b1, b2
    x = jnp.transpose(x_nchw, (0, 2, 3, 1))                 # NCHW -> NHWC
    y1 = conv_bn_stage(x, w1, g1, bt1, ksize=4, stride=2, dilation=2, padding=3)
    y2 = conv_bn_stage(y1, w2, g2, bt2, ksize=3, stride=1, dilation=1, padding=1)
    return jnp.transpose(y2, (0, 3, 1, 2))                  # NHWC -> NCHW


# ------------------------ pure-XLA reference (check) ---------------------------
def _ref_forward(x, w1, w2, mxu_dtype=MXU_DTYPE):
    """Reference with matching MXU input dtype and f32 accumulation."""
    dn = ("NCHW", "OIHW", "NCHW")

    def conv(z, w, stride, pad, dil):
        return jax.lax.conv_general_dilated(
            z.astype(mxu_dtype), w.astype(mxu_dtype),
            window_strides=(stride, stride), padding=((pad, pad), (pad, pad)),
            rhs_dilation=(dil, dil), dimension_numbers=dn,
            preferred_element_type=jnp.float32)

    def bn(z):
        m = z.mean(axis=(0, 2, 3), keepdims=True)
        v = ((z - m) ** 2).mean(axis=(0, 2, 3), keepdims=True)
        return (z - m) / jnp.sqrt(v + EPS)

    y = bn(conv(x, w1, 2, 3, 2))
    return bn(conv(y, w2, 1, 1, 1))


if __name__ == "__main__":
    N, Cin, H, W = 2, 4, 16, 16
    Cout = 8

    key = jax.random.PRNGKey(0)
    k = jax.random.split(key, 5)
    x = jax.random.normal(k[0], (N, Cin, H, W), jnp.float32)
    # Deterministic synthetic parameters (module __init__ shapes).
    w1 = jax.random.normal(k[1], (Cin, Cin, 4, 4), jnp.float32) * 0.1
    b1 = jax.random.normal(k[2], (Cin,), jnp.float32) * 0.1
    w2 = jax.random.normal(k[3], (Cout, Cin, 3, 3), jnp.float32) * 0.1
    b2 = jax.random.normal(k[4], (Cout,), jnp.float32) * 0.1
    # BatchNorm affine params at PyTorch defaults (gamma=1, beta=0).
    g1, bt1 = jnp.ones((Cin,), jnp.float32), jnp.zeros((Cin,), jnp.float32)
    g2, bt2 = jnp.ones((Cout,), jnp.float32), jnp.zeros((Cout,), jnp.float32)
    params = (w1, b1, g1, bt1, w2, b2, g2, bt2)

    out = jax.block_until_ready(encode_block_forward(x, params))
    assert out.shape == (N, Cout, H // 2, W // 2), out.shape

    ref = _ref_forward(x, w1, w2)
    err = float(jnp.max(jnp.abs(out - ref)))
    assert jnp.allclose(out, ref, atol=1e-2, rtol=1e-2), f"mismatch vs reference: {err}"

    print("KERNEL_OK")
</pallas_src>

<mosaic_0001>
module attributes {stable_mosaic.version = 11 : i64} {
  func.func @_conv_stats_kernel(%arg0: i32, %arg1: memref<128x64xbf16, #tpu.memory_space<vmem>>, %arg2: memref<64x128xbf16, #tpu.memory_space<vmem>>, %arg3: memref<128x128xf32, #tpu.memory_space<vmem>>, %arg4: memref<8x128xf32, #tpu.memory_space<vmem>>) attributes {dimension_semantics = [#tpu.dimension_semantics<arbitrary>], iteration_bounds = array<i64: 1>, scalar_prefetch = 0 : i64, scratch_operands = 0 : i64, tpu.core_type = #tpu.core_type<tc>, window_params = [{transform_indices = @transform_0, window_bounds = array<i64: 128, 64>}, {pipeline_mode = #tpu.pipeline_mode<synchronous>, transform_indices = @transform_1, window_bounds = array<i64: 64, 128>}, {transform_indices = @transform_2, window_bounds = array<i64: 128, 128>}, {pipeline_mode = #tpu.pipeline_mode<synchronous>, transform_indices = @transform_3, window_bounds = array<i64: 8, 128>}]} {
    %c0_i32 = arith.constant 0 : i32
    %0 = arith.cmpi eq, %arg0, %c0_i32 : i32
    %1 = arith.extui %0 : i1 to i32
    %c0_i32_0 = arith.constant 0 : i32
    %2 = arith.cmpi ne, %1, %c0_i32_0 : i32
    scf.if %2 {
      %cst_17 = arith.constant 0.000000e+00 : f32
      %21 = vector.broadcast %cst_17 : f32 to vector<8x128xf32>
      %c0_18 = arith.constant 0 : index
      %c0_19 = arith.constant 0 : index
      %22 = vector.load %arg4[%c0_18, %c0_19] : memref<8x128xf32, #tpu.memory_space<vmem>>, vector<8x128xf32>
      tpu.vector_store %arg4[%c0_18, %c0_19], %21 {strides = array<i32>} : memref<8x128xf32, #tpu.memory_space<vmem>>, vector<8x128xf32>,
    } else {
    }
    %c0 = arith.constant 0 : index
    %c0_1 = arith.constant 0 : index
    %3 = vector.load %arg1[%c0, %c0_1] : memref<128x64xbf16, #tpu.memory_space<vmem>>, vector<128x64xbf16>
    %c0_2 = arith.constant 0 : index
    %c0_3 = arith.constant 0 : index
    %4 = vector.load %arg2[%c0_2, %c0_3] : memref<64x128xbf16, #tpu.memory_space<vmem>>, vector<64x128xbf16>
    %cst = arith.constant dense<0.000000e+00> : vector<128x128xf32>
    %5 = tpu.matmul %3, %4, %cst {dimension_numbers = #tpu.dot_dimension_numbers<[1], [0], [0], [1], [0, 0, 1, 1], [], []>} : vector<128x64xbf16>, vector<64x128xbf16>, vector<128x128xf32> -> vector<128x128xf32>
    %c0_4 = arith.constant 0 : index
    %c0_5 = arith.constant 0 : index
    %6 = vector.load %arg3[%c0_4, %c0_5] : memref<128x128xf32, #tpu.memory_space<vmem>>, vector<128x128xf32>
    tpu.vector_store %arg3[%c0_4, %c0_5], %5 {strides = array<i32>} : memref<128x128xf32, #tpu.memory_space<vmem>>, vector<128x128xf32>,
    %c0_6 = arith.constant 0 : index
    %c0_7 = arith.constant 0 : index
    %7 = vector.load %arg4[%c0_6, %c0_7] : memref<8x128xf32, #tpu.memory_space<vmem>>, vector<1x128xf32>
    %cst_8 = arith.constant dense<0.000000e+00> : vector<128xf32>
    %8 = vector.multi_reduction <add>, %5, %cst_8 [0] : vector<128x128xf32> to vector<128xf32>
    %9 = vector.shape_cast %8 : vector<128xf32> to vector<1x128xf32>
    %10 = arith.addf %7, %9 : vector<1x128xf32>
    %c0_9 = arith.constant 0 : index
    %c0_10 = arith.constant 0 : index
    %11 = vector.load %arg4[%c0_9, %c0_10] : memref<8x128xf32, #tpu.memory_space<vmem>>, vector<1x128xf32>
    tpu.vector_store %arg4[%c0_9, %c0_10], %10 {strides = array<i32>} : memref<8x128xf32, #tpu.memory_space<vmem>>, vector<1x128xf32>,
    %c1 = arith.constant 1 : index
    %c0_11 = arith.constant 0 : index
    %12 = vector.load %arg4[%c1, %c0_11] : memref<8x128xf32, #tpu.memory_space<vmem>>, vector<1x128xf32>
    %13 = arith.mulf %5, %5 : vector<128x128xf32>
    %cst_12 = arith.constant dense<0.000000e+00> : vector<128xf32>
    %14 = vector.multi_reduction <add>, %13, %cst_12 [0] : vector<128x128xf32> to vector<128xf32>
    %15 = vector.shape_cast %14 : vector<128xf32> to vector<1x128xf32>
    %16 = arith.addf %12, %15 : vector<1x128xf32>
    %c1_13 = arith.constant 1 : index
    %c0_14 = arith.constant 0 : index
    %17 = vector.load %arg4[%c1_13, %c0_14] : memref<8x128xf32, #tpu.memory_space<vmem>>, vector<1x128xf32>
    tpu.vector_store %arg4[%c1_13, %c0_14], %16 {strides = array<i32>} : memref<8x128xf32, #tpu.memory_space<vmem>>, vector<1x128xf32>,
    %c0_i32_15 = arith.constant 0 : i32
    %18 = arith.cmpi eq, %arg0, %c0_i32_15 : i32
    %19 = arith.extui %18 : i1 to i32
    %c0_i32_16 = arith.constant 0 : i32
    %20 = arith.cmpi ne, %19, %c0_i32_16 : i32
    scf.if %20 {
      %c0_17 = arith.constant 0 : index
      %c0_18 = arith.constant 0 : index
      %21 = vector.load %arg4[%c0_17, %c0_18] : memref<8x128xf32, #tpu.memory_space<vmem>>, vector<1x128xf32>
      %cst_19 = arith.constant 7.812500e-03 : f32
      %22 = vector.broadcast %cst_19 : f32 to vector<1x128xf32>
      %23 = arith.mulf %21, %22 : vector<1x128xf32>
      %c1_20 = arith.constant 1 : index
      %c0_21 = arith.constant 0 : index
      %24 = vector.load %arg4[%c1_20, %c0_21] : memref<8x128xf32, #tpu.memory_space<vmem>>, vector<1x128xf32>
      %cst_22 = arith.constant 7.812500e-03 : f32
      %25 = vector.broadcast %cst_22 : f32 to vector<1x128xf32>
      %26 = arith.mulf %24, %25 : vector<1x128xf32>
      %27 = arith.mulf %23, %23 : vector<1x128xf32>
      %28 = arith.subf %26, %27 : vector<1x128xf32>
      %cst_23 = arith.constant 0.000000e+00 : f32
      %29 = vector.broadcast %cst_23 : f32 to vector<1x128xf32>
      %30 = arith.maximumf %28, %29 : vector<1x128xf32>
      %c0_24 = arith.constant 0 : index
      %c0_25 = arith.constant 0 : index
      %31 = vector.load %arg4[%c0_24, %c0_25] : memref<8x128xf32, #tpu.memory_space<vmem>>, vector<1x128xf32>
      tpu.vector_store %arg4[%c0_24, %c0_25], %23 {strides = array<i32>} : memref<8x128xf32, #tpu.memory_space<vmem>>, vector<1x128xf32>,
      %cst_26 = arith.constant 9.99999974E-6 : f32
      %32 = vector.broadcast %cst_26 : f32 to vector<1x128xf32>
      %33 = arith.addf %30, %32 : vector<1x128xf32>
      %34 = math.rsqrt %33 : vector<1x128xf32>
      %c1_27 = arith.constant 1 : index
      %c0_28 = arith.constant 0 : index
      %35 = vector.load %arg4[%c1_27, %c0_28] : memref<8x128xf32, #tpu.memory_space<vmem>>, vector<1x128xf32>
      tpu.vector_store %arg4[%c1_27, %c0_28], %34 {strides = array<i32>} : memref<8x128xf32, #tpu.memory_space<vmem>>, vector<1x128xf32>,
    } else {
    }
    return
  }
  func.func @transform_0(%arg0: i32) -> (i32, i32) {
    %c0_i32 = arith.constant 0 : i32
    %c0_i32_0 = arith.constant 0 : i32
    return %arg0, %c0_i32 : i32, i32
  }
  func.func @transform_1(%arg0: i32) -> (i32, i32) {
    %c0_i32 = arith.constant 0 : i32
    %c0_i32_0 = arith.constant 0 : i32
    %c0_i32_1 = arith.constant 0 : i32
    return %c0_i32, %c0_i32_0 : i32, i32
  }
  func.func @transform_2(%arg0: i32) -> (i32, i32) {
    %c0_i32 = arith.constant 0 : i32
    %c0_i32_0 = arith.constant 0 : i32
    return %arg0, %c0_i32 : i32, i32
  }
  func.func @transform_3(%arg0: i32) -> (i32, i32) {
    %c0_i32 = arith.constant 0 : i32
    %c0_i32_0 = arith.constant 0 : i32
    %c0_i32_1 = arith.constant 0 : i32
    return %c0_i32, %c0_i32_0 : i32, i32
  }
}

</mosaic_0001>

<llo_original>
// kernel: tpu_custom_call.1
$region0: #{tpu_custom_call.1}
  #allocation0 [shape = 'u32[]', space=smem, size = 0x4, offset = 0x4, fixed_abs, tag = 'smem constant byte address 0x4 - core index']
  #allocation1 [shape = 'u32[144,128]{1,0:T(1,128)}', space=vmem, size = 0x12000, scoped, tag = 'internal scratch']
  %s0 = inlined_call_operand.vmem [shape: bf16[128,64], index: 0, kind: input, shape index: {}]
  %s1 = inlined_call_operand.vmem [shape: bf16[64,128], index: 1, kind: input, shape index: {}]
  %s2 = inlined_call_operand.hbm [shape: f32[128,128], index: 2, kind: output, shape index: {0}]
  %s3 = inlined_call_operand.hbm [shape: f32[8,128], index: 3, kind: output, shape index: {1}]
  %4 = xla_tuple %s2, %s3
  %s5 = sld [smem:[#allocation0]]
  $region34: #{tpu_custom_call.1} parent=0
    _
  %s7 = ssub.s32 1, %s5
  %s8 = scalar_select 0, %s7, %s5
  $region1: #{tpu_custom_call.1} parent=0
    #allocation2 [shape = 'u8[65536]{0}', space=vmem, size = 0x10000, scoped, tag = 'output window, operand 0, single buffered']
    #allocation3 [shape = 's32[1]{0}', space=sflag, size = 0x4, scoped, tag = 'scoped memory for tpu_custom_call.1']
    #allocation4 [shape = 'u8[4096]{0}', space=vmem, size = 0x1000, scoped, tag = 'output window, operand 1, single buffered']
    #allocation5 [shape = 's32[1]{0}', space=sflag, size = 0x4, scoped, tag = 'scoped memory for tpu_custom_call.1']
    %9 = vsyncpa [#allocation3], 0
    %10 = vsyncpa [#allocation5], 0
    // Predicated region
    $region2: #{tpu_custom_call.1} parent=1 // pred_check
      _
    $region3: #{tpu_custom_call.1} parent=1 // pred_check_branch
      %12 = sbr.rel (0) target = $region5
    $region4: #{tpu_custom_call.1} parent=1 // pred_region
      _
    $region5: #{tpu_custom_call.1} parent=1 // pred_fallthru
      _
    // Predicated region
    $region6: #{tpu_custom_call.1} parent=1 // pred_check
      _
    $region7: #{tpu_custom_call.1} parent=1 // pred_check_branch
      %14 = sbr.rel (0) target = $region9
    $region8: #{tpu_custom_call.1} parent=1 // pred_region
      _
    $region9: #{tpu_custom_call.1} parent=1 // pred_fallthru
      _
    %p16 = scmp.eq.s32.totalorder 0, 0
    // Predicated region
    $region10: #{tpu_custom_call.1} parent=1 // pred_check
      %p17 = pneg %p16
    $region11: #{tpu_custom_call.1} parent=1 // pred_check_branch
      %19 = sbr.rel (%p17) target = $region13
    $region12: #{tpu_custom_call.1} parent=1 // pred_region
      %20 = vst [vmem:[#allocation4] sm:$0xff] 0.0
    $region13: #{tpu_custom_call.1} parent=1 // pred_fallthru
      _
    %v21 = vld [vmem:[%s0] sm:$0xf]
    %v22 = vld [vmem:[%s0 + $0x4] sm:$0xf]
    %v23 = vld [vmem:[%s0 + $0x8] sm:$0xf]
    %v24 = vld [vmem:[%s0 + $0xc] sm:$0xf]
    %v25 = vld [vmem:[%s0 + $0x10] sm:$0xf]
    %v26 = vld [vmem:[%s0 + $0x14] sm:$0xf]
    %v27 = vld [vmem:[%s0 + $0x18] sm:$0xf]
    %v28 = vld [vmem:[%s0 + $0x1c] sm:$0xf]
    %v29 = vld [vmem:[%s0 + $0x20] sm:$0xf]
    %v30 = vld [vmem:[%s0 + $0x24] sm:$0xf]
    %v31 = vld [vmem:[%s0 + $0x28] sm:$0xf]
    %v32 = vld [vmem:[%s0 + $0x2c] sm:$0xf]
    %v33 = vld [vmem:[%s0 + $0x30] sm:$0xf]
    %v34 = vld [vmem:[%s0 + $0x34] sm:$0xf]
    %v35 = vld [vmem:[%s0 + $0x38] sm:$0xf]
    %v36 = vld [vmem:[%s0 + $0x3c] sm:$0xf]
    %v37 = vld [vmem:[%s1] sm:$0xf]
    %v38 = vld [vmem:[%s1 + $0x4] sm:$0xf]
    %v39 = vld [vmem:[%s1 + $0x8] sm:$0xf]
    %v40 = vld [vmem:[%s1 + $0xc] sm:$0xf]
    %v41 = vld [vmem:[%s1 + $0x10] sm:$0xf]
    %v42 = vld [vmem:[%s1 + $0x14] sm:$0xf]
    %v43 = vld [vmem:[%s1 + $0x18] sm:$0xf]
    %v44 = vld [vmem:[%s1 + $0x1c] sm:$0xf]
    %v61 = vunpack.c.l.b16 %v21
    %v62 = vunpack.c.l.b16 %v22
    %v63 = vunpack.c.l.b16 %v23
    %v64 = vunpack.c.l.b16 %v24
    %v65 = vunpack.c.l.b16 %v25
    %v66 = vunpack.c.l.b16 %v26
    %v67 = vunpack.c.l.b16 %v27
    %v68 = vunpack.c.l.b16 %v28
    %v69 = vunpack.c.l.b16 %v29
    %v70 = vunpack.c.l.b16 %v30
    %v71 = vunpack.c.l.b16 %v31
    %v72 = vunpack.c.l.b16 %v32
    %v73 = vunpack.c.l.b16 %v33
    %v74 = vunpack.c.l.b16 %v34
    %v75 = vunpack.c.l.b16 %v35
    %v76 = vunpack.c.l.b16 %v36
    %v77 = vpack.c.b16 %v62, %v61
    %v78 = vpack.c.b16 %v64, %v63
    %v79 = vpack.c.b16 %v66, %v65
    %v80 = vpack.c.b16 %v68, %v67
    %v81 = vpack.c.b16 %v70, %v69
    %v82 = vpack.c.b16 %v72, %v71
    %v83 = vpack.c.b16 %v74, %v73
    %v84 = vpack.c.b16 %v76, %v75
    %v93 = vunpack.c.l.b16 %v37
    %v94 = vunpack.c.l.b16 %v38
    %v95 = vunpack.c.l.b16 %v39
    %v96 = vunpack.c.l.b16 %v40
    %v97 = vunpack.c.l.b16 %v41
    %v98 = vunpack.c.l.b16 %v42
    %v99 = vunpack.c.l.b16 %v43
    %v100 = vunpack.c.l.b16 %v44
    %v101 = vpack.c.b16 %v94, %v93
    %v102 = vpack.c.b16 %v96, %v95
    %v103 = vpack.c.b16 %v98, %v97
    %v104 = vpack.c.b16 %v100, %v99
    %vm109 = vcmask 523264
    %v111 = vsel %vm109, %v77, 0
    %v114 = vsel %vm109, %v78, 0
    %v117 = vsel %vm109, %v79, 0
    %v120 = vsel %vm109, %v80, 0
    %v123 = vsel %vm109, %v81, 0
    %v126 = vsel %vm109, %v82, 0
    %v129 = vsel %vm109, %v83, 0
    %v132 = vsel %vm109, %v84, 0
    %134 = vmatprep.subr.bf16.mxu0 0
    %135 = vmatpush1.bf16.msra.mxu0 %v101
    %136 = vmatprep.subr.bf16.mxu0 0
    %137 = vmatpush1.bf16.msra.mxu0 %v102
    %138 = vmatprep.subr.bf16.mxu0 0
    %139 = vmatpush1.bf16.msra.mxu0 %v103
    %140 = vmatprep.subr.bf16.mxu0 0
    %141 = vmatpush1.bf16.msra.mxu0 %v104
    %142 = vmatprep.subr.bf16.mxu0 0
    %143 = vmatpush1.bf16.msra.mxu0 0
    %144 = vmatprep.subr.bf16.mxu0 0
    %145 = vmatpush1.bf16.msra.mxu0 0
    %146 = vmatprep.subr.bf16.mxu0 0
    %147 = vmatpush1.bf16.msra.mxu0 0
    %148 = vmatprep.subr.bf16.mxu0 0
    %149 = vmatpush1.bf16.msra.mxu0 0
    %150 = vmatprep.subr.bf16.mxu0 0
    %151 = vmatpush1.bf16.msra.mxu0 0
    %152 = vmatprep.subr.bf16.mxu0 0
    %153 = vmatpush1.bf16.msra.mxu0 0
    %154 = vmatprep.subr.bf16.mxu0 0
    %155 = vmatpush1.bf16.msra.mxu0 0
    %156 = vmatprep.subr.bf16.mxu0 0
    %157 = vmatpush1.bf16.msra.mxu0 0
    %158 = vmatprep.subr.bf16.mxu0 0
    %159 = vmatpush1.bf16.msra.mxu0 0
    %160 = vmatprep.subr.bf16.mxu0 0
    %161 = vmatpush1.bf16.msra.mxu0 0
    %162 = vmatprep.subr.bf16.mxu0 0
    %163 = vmatpush1.bf16.msra.mxu0 0
    %164 = vmatprep.subr.bf16.mxu0 0
    %165 = vmatpush1.bf16.msra.mxu0 0
    %166 = vmatprep.mubr.bf16.mxu0 0
    %167 = vmatmul.mubr.bf16.gmra.mrb[0].mxu0 %v111
    %v168 = vpop.f32.mrb[0].mxu0
    %v169 = vadd.f32 0.0, %v168
    %v170 = vpop.f32.mrb[0].mxu0
    %v171 = vpop.f32.mrb[0].mxu0
    %v172 = vadd.f32 0.0, %v171
    %v173 = vpop.f32.mrb[0].mxu0
    %174 = vmatprep.mubr.bf16.mxu0 0
    %175 = vmatmul.mubr.bf16.gmra.mrb[0].mxu0 %v114
    %v176 = vpop.f32.mrb[0].mxu0
    %v177 = vadd.f32 0.0, %v176
    %v178 = vpop.f32.mrb[0].mxu0
    %v179 = vpop.f32.mrb[0].mxu0
    %v180 = vadd.f32 0.0, %v179
    %v181 = vpop.f32.mrb[0].mxu0
    %182 = vmatprep.mubr.bf16.mxu0 0
    %183 = vmatmul.mubr.bf16.gmra.mrb[0].mxu0 %v117
    %v184 = vpop.f32.mrb[0].mxu0
    %v185 = vadd.f32 0.0, %v184
    %v186 = vpop.f32.mrb[0].mxu0
    %v187 = vpop.f32.mrb[0].mxu0
    %v188 = vadd.f32 0.0, %v187
    %v189 = vpop.f32.mrb[0].mxu0
    %190 = vmatprep.mubr.bf16.mxu0 0
    %191 = vmatmul.mubr.bf16.gmra.mrb[0].mxu0 %v120
    %v192 = vpop.f32.mrb[0].mxu0
    %v193 = vadd.f32 0.0, %v192
    %v194 = vpop.f32.mrb[0].mxu0
    %v195 = vpop.f32.mrb[0].mxu0
    %v196 = vadd.f32 0.0, %v195
    %v197 = vpop.f32.mrb[0].mxu0
    %198 = vmatprep.mubr.bf16.mxu0 0
    %199 = vmatmul.mubr.bf16.gmra.mrb[0].mxu0 %v123
    %v200 = vpop.f32.mrb[0].mxu0
    %v201 = vadd.f32 0.0, %v200
    %v202 = vpop.f32.mrb[0].mxu0
    %v203 = vpop.f32.mrb[0].mxu0
    %v204 = vadd.f32 0.0, %v203
    %v205 = vpop.f32.mrb[0].mxu0
    %206 = vmatprep.mubr.bf16.mxu0 0
    %207 = vmatmul.mubr.bf16.gmra.mrb[0].mxu0 %v126
    %v208 = vpop.f32.mrb[0].mxu0
    %v209 = vadd.f32 0.0, %v208
    %v210 = vpop.f32.mrb[0].mxu0
    %v211 = vpop.f32.mrb[0].mxu0
    %v212 = vadd.f32 0.0, %v211
    %v213 = vpop.f32.mrb[0].mxu0
    %214 = vmatprep.mubr.bf16.mxu0 0
    %215 = vmatmul.mubr.bf16.gmra.mrb[0].mxu0 %v129
    %v216 = vpop.f32.mrb[0].mxu0
    %v217 = vadd.f32 0.0, %v216
    %v218 = vpop.f32.mrb[0].mxu0
    %v219 = vpop.f32.mrb[0].mxu0
    %v220 = vadd.f32 0.0, %v219
    %v221 = vpop.f32.mrb[0].mxu0
    %222 = vmatprep.mubr.bf16.mxu0 0
    %223 = vmatmul.mubr.bf16.gmra.mrb[0].mxu0 %v132
    %v224 = vpop.f32.mrb[0].mxu0
    %v225 = vadd.f32 0.0, %v224
    %v226 = vpop.f32.mrb[0].mxu0
    %v227 = vpop.f32.mrb[0].mxu0
    %v228 = vadd.f32 0.0, %v227
    %v229 = vpop.f32.mrb[0].mxu0
    %230 = vdwg.mxu0
    %231 = vst [vmem:[#allocation2] sm:$0xff] %v169
    %232 = vst [vmem:[#allocation2 + $0x8] sm:$0xff] %v172
    %233 = vst [vmem:[#allocation2 + $0x10] sm:$0xff] %v177
    %234 = vst [vmem:[#allocation2 + $0x18] sm:$0xff] %v180
    %235 = vst [vmem:[#allocation2 + $0x20] sm:$0xff] %v185
    %236 = vst [vmem:[#allocation2 + $0x28] sm:$0xff] %v188
    %237 = vst [vmem:[#allocation2 + $0x30] sm:$0xff] %v193
    %238 = vst [vmem:[#allocation2 + $0x38] sm:$0xff] %v196
    %239 = vst [vmem:[#allocation2 + $0x40] sm:$0xff] %v201
    %240 = vst [vmem:[#allocation2 + $0x48] sm:$0xff] %v204
    %241 = vst [vmem:[#allocation2 + $0x50] sm:$0xff] %v209
    %242 = vst [vmem:[#allocation2 + $0x58] sm:$0xff] %v212
    %243 = vst [vmem:[#allocation2 + $0x60] sm:$0xff] %v217
    %244 = vst [vmem:[#allocation2 + $0x68] sm:$0xff] %v220
    %245 = vst [vmem:[#allocation2 + $0x70] sm:$0xff] %v225
    %246 = vst [vmem:[#allocation2 + $0x78] sm:$0xff] %v228
    %v247 = vld [vmem:[#allocation4] sm:$0x1]
    %v248 = vadd.f32 %v169, %v172
    %v249 = vadd.f32 %v248, %v177
    %v250 = vadd.f32 %v249, %v180
    %v251 = vadd.f32 %v250, %v185
    %v252 = vadd.f32 %v251, %v188
    %v253 = vadd.f32 %v252, %v193
    %v254 = vadd.f32 %v253, %v196
    %v255 = vadd.f32 %v254, %v201
    %v256 = vadd.f32 %v255, %v204
    %v257 = vadd.f32 %v256, %v209
    %v258 = vadd.f32 %v257, %v212
    %v259 = vadd.f32 %v258, %v217
    %v260 = vadd.f32 %v259, %v220
    %v261 = vadd.f32 %v260, %v225
    %v262 = vadd.f32 %v261, %v228
    %v263 = vrot.slane %v262, 4
    %v264 = vadd.f32 %v262, %v263
    %v265 = vrot.slane %v264, 2
    %v266 = vadd.f32 %v264, %v265
    %v267 = vrot.slane %v266, 1
    %v268 = vadd.f32 %v266, %v267
    %v269 = vadd.f32 %v247, %v268
    %270 = vst [vmem:[#allocation4] sm:$0x1] %v269
    %v271 = vld [vmem:[#allocation4 + $0x1] sm:$0x1]
    %v272 = vmul.f32 %v169, %v169
    %v273 = vmul.f32 %v172, %v172
    %v274 = vmul.f32 %v177, %v177
    %v275 = vmul.f32 %v180, %v180
    %v276 = vmul.f32 %v185, %v185
    %v277 = vmul.f32 %v188, %v188
    %v278 = vmul.f32 %v193, %v193
    %v279 = vmul.f32 %v196, %v196
    %v280 = vmul.f32 %v201, %v201
    %v281 = vmul.f32 %v204, %v204
    %v282 = vmul.f32 %v209, %v209
    %v283 = vmul.f32 %v212, %v212
    %v284 = vmul.f32 %v217, %v217
    %v285 = vmul.f32 %v220, %v220
    %v286 = vmul.f32 %v225, %v225
    %v287 = vmul.f32 %v228, %v228
    %v288 = vadd.f32 %v272, %v273
    %v289 = vadd.f32 %v288, %v274
    %v290 = vadd.f32 %v289, %v275
    %v291 = vadd.f32 %v290, %v276
    %v292 = vadd.f32 %v291, %v277
    %v293 = vadd.f32 %v292, %v278
    %v294 = vadd.f32 %v293, %v279
    %v295 = vadd.f32 %v294, %v280
    %v296 = vadd.f32 %v295, %v281
    %v297 = vadd.f32 %v296, %v282
    %v298 = vadd.f32 %v297, %v283
    %v299 = vadd.f32 %v298, %v284
    %v300 = vadd.f32 %v299, %v285
    %v301 = vadd.f32 %v300, %v286
    %v302 = vadd.f32 %v301, %v287
    %v303 = vrot.slane %v302, 4
    %v304 = vadd.f32 %v302, %v303
    %v305 = vrot.slane %v304, 2
    %v306 = vadd.f32 %v304, %v305
    %v307 = vrot.slane %v306, 1
    %v308 = vadd.f32 %v306, %v307
    %v309 = vadd.f32 %v271, %v308
    %310 = vst [vmem:[#allocation4 + $0x1] sm:$0x1] %v309
    // Predicated region
    $region14: #{tpu_custom_call.1} parent=1 // pred_check
      %p311 = pneg %p16
    $region15: #{tpu_custom_call.1} parent=1 // pred_check_branch
      %313 = sbr.rel (%p311) target = $region17
    $region16: #{tpu_custom_call.1} parent=1 // pred_region
      %v314 = vld [vmem:[#allocation4] sm:$0x1]
      %v315 = vmul.f32 %v314, 0.0078125
      %v316 = vld [vmem:[#allocation4 + $0x1] sm:$0x1]
      %v317 = vmul.f32 %v316, 0.0078125
      %v318 = vmul.f32 %v315, %v315
      %v319 = vsub.f32 %v317, %v318
      %v320 = vmax.f32 %v319, 0.0
      %321 = vst [vmem:[#allocation4] sm:$0x1] %v315
      %v322 = vadd.f32 %v320, 1e-05
      %v323 = vrsqrt.pop %v322
      %324 = vst [vmem:[#allocation4 + $0x1] sm:$0x1] %v323
    $region17: #{tpu_custom_call.1} parent=1 // pred_fallthru
      _
    // Predicated region
    $region18: #{tpu_custom_call.1} parent=1 // pred_check
      _
    $region19: #{tpu_custom_call.1} parent=1 // pred_check_branch
      %326 = sbr.rel (0) target = $region21
    $region20: #{tpu_custom_call.1} parent=1 // pred_region
      %s328 = ssub.s32 2048, 2048
      %329 = vsyncadd [#allocation3], %s328
      %s330 = sshll.u32 [#allocation2], 4
      %s331 = int_to_ptr.vmem [resolvable:$true] %s330
      %336 = dma.vmem_to_hbm [thread:$0]  %s331, 2048, %s2, [#allocation3], 128, 128, 8
    $region21: #{tpu_custom_call.1} parent=1 // pred_fallthru
      _
    // Predicated region
    $region22: #{tpu_custom_call.1} parent=1 // pred_check
      _
    $region23: #{tpu_custom_call.1} parent=1 // pred_check_branch
      %338 = sbr.rel (0) target = $region25
    $region24: #{tpu_custom_call.1} parent=1 // pred_region
      %s340 = ssub.s32 128, 128
      %341 = vsyncadd [#allocation5], %s340
      %s343 = sshll.u32 [#allocation4], 4
      %s344 = int_to_ptr.vmem [resolvable:$true] %s343
      %346 = dma.vmem_to_hbm [thread:$0]  %s344, 128, %s3, [#allocation5]
    $region25: #{tpu_custom_call.1} parent=1 // pred_fallthru
      _
    // Predicated region
    $region26: #{tpu_custom_call.1} parent=1 // pred_check
      _
    $region27: #{tpu_custom_call.1} parent=1 // pred_check_branch
      %348 = sbr.rel (0) target = $region29
    $region28: #{tpu_custom_call.1} parent=1 // pred_region
      %349 = dma.done [#allocation3], 2048
    $region29: #{tpu_custom_call.1} parent=1 // pred_fallthru
      _
    // Predicated region
    $region30: #{tpu_custom_call.1} parent=1 // pred_check
      _
    $region31: #{tpu_custom_call.1} parent=1 // pred_check_branch
      %351 = sbr.rel (0) target = $region33
    $region32: #{tpu_custom_call.1} parent=1 // pred_region
      %352 = dma.done [#allocation5], 128
    $region33: #{tpu_custom_call.1} parent=1 // pred_fallthru
      _
    %353 = vsyncpa [#allocation3], 1
    %354 = vsyncpa [#allocation5], 1

</llo_original>
